<compile_context>
chip_gen: v7x
topology: tpu7x:2x2x1
jax: 0.10.0
libtpu: 0.0.40
codegen_flags: <defaults>
</compile_context>

<pallas_src>
import functools

import jax
import jax.numpy as jnp
from jax.experimental import pallas as pl
from jax.experimental.pallas import tpu as pltpu


def fasd_kernel(x_ref, w1_ref, w2_ref, b2_ref, o_ref):
    """One batch-tile of the FASD forward pass.

    x_ref : (TB, input_dim)      VMEM, bf16 (streamed per grid step)
    w1_ref: (input_dim, hidden)  VMEM, bf16 (resident, constant block index)
    w2_ref: (hidden, classes)    VMEM, bf16 (resident)
    b2_ref: (1, classes)         VMEM, f32  (resident)
    o_ref : (TB, classes)        VMEM, f32
    """
    # Encoder: Linear (no bias) on the MXU, f32 accumulate; ReLU in f32 (VPU).
    h = jnp.dot(x_ref[...], w1_ref[...], preferred_element_type=jnp.float32)
    h = jnp.maximum(h, 0.0)
    # Predictor: cast activations back to the weight dtype so the second matmul
    # also takes the native bf16 MXU path; bias add and softmax stay in f32.
    logits = (
        jnp.dot(h.astype(w2_ref.dtype), w2_ref[...],
                preferred_element_type=jnp.float32)
        + b2_ref[...]
    )
    # Numerically stable softmax over the class axis; reciprocal on the EUP.
    m = jnp.max(logits, axis=-1, keepdims=True)
    e = jnp.exp(logits - m)
    denom = jnp.sum(e, axis=-1, keepdims=True)
    o_ref[...] = (e * pl.reciprocal(denom, approx=True)).astype(o_ref.dtype)
    # TODO(synk): if num_classes ever grows, keep it a multiple of 128 (lane-dense
    # stores); at 8 classes the masked store is a negligible fraction of bytes.


def _round_up(n, m):
    return ((n + m - 1) // m) * m


@functools.partial(
    jax.jit, static_argnames=("tile_b", "compute_dtype", "single_buffer_weights")
)
def fasd_forward(x, w1, w2, b2, *, tile_b=512, compute_dtype=jnp.bfloat16,
                 single_buffer_weights=True):
    """x: (B, input_dim) f32; w1: (input_dim, hidden); w2: (hidden, classes); b2: (classes,)."""
    B, input_dim = x.shape
    hidden = w1.shape[1]
    num_classes = w2.shape[1]

    # Stream the matmul operands at reduced precision; keep bias / softmax in f32.
    xc = x.astype(compute_dtype)
    w1c = w1.astype(compute_dtype)
    w2c = w2.astype(compute_dtype)
    b2_2d = b2.reshape(1, num_classes).astype(jnp.float32)

    # Large batch tiles, clamped to the (sublane-padded) batch; pad instead of
    # asserting an exact multiple, and slice the padding back off afterwards.
    tile_b_eff = min(tile_b, _round_up(B, 8))
    B_pad = _round_up(B, tile_b_eff)
    if B_pad != B:
        xc = jnp.pad(xc, ((0, B_pad - B), (0, 0)))
    grid = (B_pad // tile_b_eff,)

    # VMEM budget: double-buffered x/out tiles + single weights copy, 2x headroom,
    # clamped to [32 MiB, 60 MiB] so it is legal on v5e/v6e (128 MiB) and v7x (64 MiB).
    itemsize = jnp.dtype(compute_dtype).itemsize
    vmem_bytes = (
        2 * tile_b_eff * (input_dim * itemsize + num_classes * 4)
        + (input_dim * hidden + hidden * num_classes) * itemsize
        + num_classes * 4
    )
    vmem_limit = int(min(max(2 * vmem_bytes, 32 * 1024 * 1024), 60 * 1024 * 1024))

    if single_buffer_weights:
        # Weights/bias have a constant block index -> never re-fetched; a single
        # buffer is enough and frees VMEM for larger batch tiles.
        w1_spec = pl.BlockSpec((input_dim, hidden), lambda i: (0, 0),
                               pipeline_mode=pl.Buffered(1))
        w2_spec = pl.BlockSpec((hidden, num_classes), lambda i: (0, 0),
                               pipeline_mode=pl.Buffered(1))
        b2_spec = pl.BlockSpec((1, num_classes), lambda i: (0, 0),
                               pipeline_mode=pl.Buffered(1))
    else:
        w1_spec = pl.BlockSpec((input_dim, hidden), lambda i: (0, 0))
        w2_spec = pl.BlockSpec((hidden, num_classes), lambda i: (0, 0))
        b2_spec = pl.BlockSpec((1, num_classes), lambda i: (0, 0))

    out = pl.pallas_call(
        fasd_kernel,
        out_shape=jax.ShapeDtypeStruct((B_pad, num_classes), jnp.float32),
        grid_spec=pltpu.PrefetchScalarGridSpec(
            num_scalar_prefetch=0,
            grid=grid,
            in_specs=[
                pl.BlockSpec((tile_b_eff, input_dim), lambda i: (i, 0)),
                w1_spec,
                w2_spec,
                b2_spec,
            ],
            out_specs=pl.BlockSpec((tile_b_eff, num_classes), lambda i: (i, 0)),
        ),
        compiler_params=pltpu.CompilerParams(
            dimension_semantics=("parallel",),
            vmem_limit_bytes=vmem_limit,
        ),
    )(xc, w1c, w2c, b2_2d)
    return out[:B]


def init_params(key, input_dim, hidden_dim, num_classes):
    """Deterministic init mirroring torch.nn.Linear defaults (uniform +/- 1/sqrt(fan_in))."""
    k1, k2, k3 = jax.random.split(key, 3)
    bound1 = 1.0 / jnp.sqrt(jnp.float32(input_dim))
    bound2 = 1.0 / jnp.sqrt(jnp.float32(hidden_dim))
    # Stored as (in_features, out_features) == W^T of the PyTorch layout.
    w1 = jax.random.uniform(k1, (input_dim, hidden_dim), jnp.float32, -bound1, bound1)
    w2 = jax.random.uniform(k2, (hidden_dim, num_classes), jnp.float32, -bound2, bound2)
    b2 = jax.random.uniform(k3, (num_classes,), jnp.float32, -bound2, bound2)
    return w1, w2, b2


def fasd_reference_mixed(x, w1, w2, b2, compute_dtype=jnp.bfloat16):
    """Pure-JAX reference mirroring the kernel's bf16-stream / f32-accumulate math."""
    xc = x.astype(compute_dtype)
    w1c = w1.astype(compute_dtype)
    w2c = w2.astype(compute_dtype)
    h = jnp.maximum(jnp.dot(xc, w1c, preferred_element_type=jnp.float32), 0.0)
    logits = jnp.dot(h.astype(compute_dtype), w2c,
                     preferred_element_type=jnp.float32) + b2[None, :]
    return jax.nn.softmax(logits, axis=-1)


def fasd_reference_f32(x, w1, w2, b2):
    """Full-precision reference of the same forward pass."""
    h = jnp.maximum(x @ w1, 0.0)
    logits = h @ w2 + b2[None, :]
    return jax.nn.softmax(logits, axis=-1)


if __name__ == "__main__":
    # Small tabular shapes consistent with the module: (batch, input_dim) data.
    batch, input_dim, hidden_dim, num_classes = 16, 32, 32, 8

    key = jax.random.PRNGKey(0)
    kx, kp = jax.random.split(key)
    x = jax.random.normal(kx, (batch, input_dim), jnp.float32)
    w1, w2, b2 = init_params(kp, input_dim, hidden_dim, num_classes)

    try:
        out = jax.block_until_ready(fasd_forward(x, w1, w2, b2))
    except Exception:
        # Fallback if this JAX build does not accept single-buffered BlockSpecs
        # (pipeline_mode=pl.Buffered(1)) on the pallas_call pipeline.
        out = jax.block_until_ready(
            fasd_forward(x, w1, w2, b2, single_buffer_weights=False)
        )

    ref_mixed = fasd_reference_mixed(x, w1, w2, b2)
    ref_f32 = fasd_reference_f32(x, w1, w2, b2)

    assert out.shape == (batch, num_classes)
    # Tight check vs. a reference using identical bf16-stream / f32-accumulate math
    # (tolerance covers the approx EUP reciprocal in the softmax).
    assert jnp.allclose(out, ref_mixed, atol=3e-3, rtol=3e-3), "mismatch vs mixed-precision reference"
    # Looser sanity check vs. the full-f32 reference (covers the bf16 cast).
    assert jnp.allclose(out, ref_f32, atol=5e-2, rtol=5e-2), "mismatch vs f32 reference"
    # Rows of a softmax must sum to 1.
    assert jnp.allclose(jnp.sum(out, axis=-1), 1.0, atol=3e-3)

    print("KERNEL_OK")
</pallas_src>

<mosaic_0001>
module attributes {stable_mosaic.version = 11 : i64} {
  func.func @fasd_kernel(%arg0: i32, %arg1: memref<16x32xbf16, #tpu.memory_space<vmem>>, %arg2: memref<32x32xbf16, #tpu.memory_space<vmem>>, %arg3: memref<32x8xbf16, #tpu.memory_space<vmem>>, %arg4: memref<1x8xf32, #tpu.memory_space<vmem>>, %arg5: memref<16x8xf32, #tpu.memory_space<vmem>>) attributes {dimension_semantics = [#tpu.dimension_semantics<parallel>], iteration_bounds = array<i64: 1>, scalar_prefetch = 0 : i64, scratch_operands = 0 : i64, tpu.core_type = #tpu.core_type<tc>, window_params = [{transform_indices = @transform_0, window_bounds = array<i64: 16, 32>}, {pipeline_mode = #tpu.pipeline_mode<synchronous>, transform_indices = @transform_1, window_bounds = array<i64: 32, 32>}, {pipeline_mode = #tpu.pipeline_mode<synchronous>, transform_indices = @transform_2, window_bounds = array<i64: 32, 8>}, {pipeline_mode = #tpu.pipeline_mode<synchronous>, transform_indices = @transform_3, window_bounds = array<i64: 1, 8>}, {transform_indices = @transform_4, window_bounds = array<i64: 16, 8>}]} {
    %c0 = arith.constant 0 : index
    %c0_0 = arith.constant 0 : index
    %0 = vector.load %arg1[%c0, %c0_0] : memref<16x32xbf16, #tpu.memory_space<vmem>>, vector<16x32xbf16>
    %c0_1 = arith.constant 0 : index
    %c0_2 = arith.constant 0 : index
    %1 = vector.load %arg2[%c0_1, %c0_2] : memref<32x32xbf16, #tpu.memory_space<vmem>>, vector<32x32xbf16>
    %cst = arith.constant dense<0.000000e+00> : vector<16x32xf32>
    %2 = tpu.matmul %0, %1, %cst {dimension_numbers = #tpu.dot_dimension_numbers<[1], [0], [0], [1], [0, 0, 1, 1], [], []>} : vector<16x32xbf16>, vector<32x32xbf16>, vector<16x32xf32> -> vector<16x32xf32>
    %cst_3 = arith.constant 0.000000e+00 : f32
    %3 = vector.broadcast %cst_3 : f32 to vector<16x32xf32>
    %4 = arith.maximumf %2, %3 : vector<16x32xf32>
    %5 = arith.truncf %4 : vector<16x32xf32> to vector<16x32xbf16>
    %c0_4 = arith.constant 0 : index
    %c0_5 = arith.constant 0 : index
    %6 = vector.load %arg3[%c0_4, %c0_5] : memref<32x8xbf16, #tpu.memory_space<vmem>>, vector<32x8xbf16>
    %cst_6 = arith.constant dense<0.000000e+00> : vector<16x8xf32>
    %7 = tpu.matmul %5, %6, %cst_6 {dimension_numbers = #tpu.dot_dimension_numbers<[1], [0], [0], [1], [0, 0, 1, 1], [], []>} : vector<16x32xbf16>, vector<32x8xbf16>, vector<16x8xf32> -> vector<16x8xf32>
    %c0_7 = arith.constant 0 : index
    %c0_8 = arith.constant 0 : index
    %8 = vector.load %arg4[%c0_7, %c0_8] : memref<1x8xf32, #tpu.memory_space<vmem>>, vector<1x8xf32>
    %9 = vector.broadcast %8 : vector<1x8xf32> to vector<16x8xf32>
    %10 = arith.addf %7, %9 : vector<16x8xf32>
    %cst_9 = arith.constant dense<0xFF800000> : vector<16xf32>
    %11 = vector.multi_reduction <maximumf>, %10, %cst_9 [1] : vector<16x8xf32> to vector<16xf32>
    %12 = vector.shape_cast %11 : vector<16xf32> to vector<16x1xf32>
    %13 = vector.broadcast %12 : vector<16x1xf32> to vector<16x8xf32>
    %14 = arith.subf %10, %13 : vector<16x8xf32>
    %15 = math.exp %14 : vector<16x8xf32>
    %cst_10 = arith.constant dense<0.000000e+00> : vector<16xf32>
    %16 = vector.multi_reduction <add>, %15, %cst_10 [1] : vector<16x8xf32> to vector<16xf32>
    %17 = vector.shape_cast %16 : vector<16xf32> to vector<16x1xf32>
    %18 = tpu.reciprocal %17 {approx = true} : vector<16x1xf32> -> vector<16x1xf32>
    %19 = vector.broadcast %18 : vector<16x1xf32> to vector<16x8xf32>
    %20 = arith.mulf %15, %19 : vector<16x8xf32>
    %c0_11 = arith.constant 0 : index
    %c0_12 = arith.constant 0 : index
    %21 = vector.load %arg5[%c0_11, %c0_12] : memref<16x8xf32, #tpu.memory_space<vmem>>, vector<16x8xf32>
    tpu.vector_store %arg5[%c0_11, %c0_12], %20 {strides = array<i32>} : memref<16x8xf32, #tpu.memory_space<vmem>>, vector<16x8xf32>,
    return
  }
  func.func @transform_0(%arg0: i32) -> (i32, i32) {
    %c0_i32 = arith.constant 0 : i32
    %c0_i32_0 = arith.constant 0 : i32
    return %arg0, %c0_i32 : i32, i32
  }
  func.func @transform_1(%arg0: i32) -> (i32, i32) {
    %c0_i32 = arith.constant 0 : i32
    %c0_i32_0 = arith.constant 0 : i32
    %c0_i32_1 = arith.constant 0 : i32
    return %c0_i32, %c0_i32_0 : i32, i32
  }
  func.func @transform_2(%arg0: i32) -> (i32, i32) {
    %c0_i32 = arith.constant 0 : i32
    %c0_i32_0 = arith.constant 0 : i32
    %c0_i32_1 = arith.constant 0 : i32
    return %c0_i32, %c0_i32_0 : i32, i32
  }
  func.func @transform_3(%arg0: i32) -> (i32, i32) {
    %c0_i32 = arith.constant 0 : i32
    %c0_i32_0 = arith.constant 0 : i32
    %c0_i32_1 = arith.constant 0 : i32
    return %c0_i32, %c0_i32_0 : i32, i32
  }
  func.func @transform_4(%arg0: i32) -> (i32, i32) {
    %c0_i32 = arith.constant 0 : i32
    %c0_i32_0 = arith.constant 0 : i32
    return %arg0, %c0_i32 : i32, i32
  }
}

module attributes {stable_mosaic.version = 11 : i64} {
  func.func @fasd_kernel(%arg0: i32, %arg1: memref<16x32xbf16, #tpu.memory_space<vmem>>, %arg2: memref<32x32xbf16, #tpu.memory_space<vmem>>, %arg3: memref<32x8xbf16, #tpu.memory_space<vmem>>, %arg4: memref<1x8xf32, #tpu.memory_space<vmem>>, %arg5: memref<16x8xf32, #tpu.memory_space<vmem>>) attributes {dimension_semantics = [#tpu.dimension_semantics<parallel>], iteration_bounds = array<i64: 1>, scalar_prefetch = 0 : i64, scratch_operands = 0 : i64, tpu.core_type = #tpu.core_type<tc>, window_params = [{transform_indices = @transform_0, window_bounds = array<i64: 16, 32>}, {pipeline_mode = #tpu.pipeline_mode<synchronous>, transform_indices = @transform_1, window_bounds = array<i64: 32, 32>}, {pipeline_mode = #tpu.pipeline_mode<synchronous>, transform_indices = @transform_2, window_bounds = array<i64: 32, 8>}, {pipeline_mode = #tpu.pipeline_mode<synchronous>, transform_indices = @transform_3, window_bounds = array<i64: 1, 8>}, {transform_indices = @transform_4, window_bounds = array<i64: 16, 8>}]} {
    %c0 = arith.constant 0 : index
    %c0_0 = arith.constant 0 : index
    %0 = vector.load %arg1[%c0, %c0_0] : memref<16x32xbf16, #tpu.memory_space<vmem>>, vector<16x32xbf16>
    %c0_1 = arith.constant 0 : index
    %c0_2 = arith.constant 0 : index
    %1 = vector.load %arg2[%c0_1, %c0_2] : memref<32x32xbf16, #tpu.memory_space<vmem>>, vector<32x32xbf16>
    %cst = arith.constant dense<0.000000e+00> : vector<16x32xf32>
    %2 = tpu.matmul %0, %1, %cst {dimension_numbers = #tpu.dot_dimension_numbers<[1], [0], [0], [1], [0, 0, 1, 1], [], []>} : vector<16x32xbf16>, vector<32x32xbf16>, vector<16x32xf32> -> vector<16x32xf32>
    %cst_3 = arith.constant 0.000000e+00 : f32
    %3 = vector.broadcast %cst_3 : f32 to vector<16x32xf32>
    %4 = arith.maximumf %2, %3 : vector<16x32xf32>
    %5 = arith.truncf %4 : vector<16x32xf32> to vector<16x32xbf16>
    %c0_4 = arith.constant 0 : index
    %c0_5 = arith.constant 0 : index
    %6 = vector.load %arg3[%c0_4, %c0_5] : memref<32x8xbf16, #tpu.memory_space<vmem>>, vector<32x8xbf16>
    %cst_6 = arith.constant dense<0.000000e+00> : vector<16x8xf32>
    %7 = tpu.matmul %5, %6, %cst_6 {dimension_numbers = #tpu.dot_dimension_numbers<[1], [0], [0], [1], [0, 0, 1, 1], [], []>} : vector<16x32xbf16>, vector<32x8xbf16>, vector<16x8xf32> -> vector<16x8xf32>
    %c0_7 = arith.constant 0 : index
    %c0_8 = arith.constant 0 : index
    %8 = vector.load %arg4[%c0_7, %c0_8] : memref<1x8xf32, #tpu.memory_space<vmem>>, vector<1x8xf32>
    %9 = vector.broadcast %8 : vector<1x8xf32> to vector<16x8xf32>
    %10 = arith.addf %7, %9 : vector<16x8xf32>
    %cst_9 = arith.constant dense<0xFF800000> : vector<16xf32>
    %11 = vector.multi_reduction <maximumf>, %10, %cst_9 [1] : vector<16x8xf32> to vector<16xf32>
    %12 = vector.shape_cast %11 : vector<16xf32> to vector<16x1xf32>
    %13 = vector.broadcast %12 : vector<16x1xf32> to vector<16x8xf32>
    %14 = arith.subf %10, %13 : vector<16x8xf32>
    %15 = math.exp %14 : vector<16x8xf32>
    %cst_10 = arith.constant dense<0.000000e+00> : vector<16xf32>
    %16 = vector.multi_reduction <add>, %15, %cst_10 [1] : vector<16x8xf32> to vector<16xf32>
    %17 = vector.shape_cast %16 : vector<16xf32> to vector<16x1xf32>
    %18 = tpu.reciprocal %17 {approx = true} : vector<16x1xf32> -> vector<16x1xf32>
    %19 = vector.broadcast %18 : vector<16x1xf32> to vector<16x8xf32>
    %20 = arith.mulf %15, %19 : vector<16x8xf32>
    %c0_11 = arith.constant 0 : index
    %c0_12 = arith.constant 0 : index
    %21 = vector.load %arg5[%c0_11, %c0_12] : memref<16x8xf32, #tpu.memory_space<vmem>>, vector<16x8xf32>
    tpu.vector_store %arg5[%c0_11, %c0_12], %20 {strides = array<i32>} : memref<16x8xf32, #tpu.memory_space<vmem>>, vector<16x8xf32>,
    return
  }
  func.func @transform_0(%arg0: i32) -> (i32, i32) {
    %c0_i32 = arith.constant 0 : i32
    %c0_i32_0 = arith.constant 0 : i32
    return %arg0, %c0_i32 : i32, i32
  }
  func.func @transform_1(%arg0: i32) -> (i32, i32) {
    %c0_i32 = arith.constant 0 : i32
    %c0_i32_0 = arith.constant 0 : i32
    %c0_i32_1 = arith.constant 0 : i32
    return %c0_i32, %c0_i32_0 : i32, i32
  }
  func.func @transform_2(%arg0: i32) -> (i32, i32) {
    %c0_i32 = arith.constant 0 : i32
    %c0_i32_0 = arith.constant 0 : i32
    %c0_i32_1 = arith.constant 0 : i32
    return %c0_i32, %c0_i32_0 : i32, i32
  }
  func.func @transform_3(%arg0: i32) -> (i32, i32) {
    %c0_i32 = arith.constant 0 : i32
    %c0_i32_0 = arith.constant 0 : i32
    %c0_i32_1 = arith.constant 0 : i32
    return %c0_i32, %c0_i32_0 : i32, i32
  }
  func.func @transform_4(%arg0: i32) -> (i32, i32) {
    %c0_i32 = arith.constant 0 : i32
    %c0_i32_0 = arith.constant 0 : i32
    return %arg0, %c0_i32 : i32, i32
  }
}

</mosaic_0001>

<llo_original>
// kernel: fasd_forward.1
$region0: #{fasd_forward.1}
  #allocation0 [shape = 'u32[]', space=smem, size = 0x4, offset = 0x4, fixed_abs, tag = 'smem constant byte address 0x4 - core index']
  #allocation1 [shape = 'u32[144,128]{1,0:T(1,128)}', space=vmem, size = 0x12000, scoped, tag = 'internal scratch']
  %s0 = inlined_call_operand.vmem [shape: bf16[16,32], index: 0, kind: input, shape index: {}]
  %s1 = inlined_call_operand.vmem [shape: bf16[32,32], index: 1, kind: input, shape index: {}]
  %s2 = inlined_call_operand.vmem [shape: bf16[32,8], index: 2, kind: input, shape index: {}]
  %s3 = inlined_call_operand.vmem [shape: f32[1,8], index: 3, kind: input, shape index: {}]
  %s4 = inlined_call_operand.vmem [shape: f32[16,8], index: 4, kind: output, shape index: {}]
  %s5 = sld [smem:[#allocation0]]
  $region26: #{fasd_forward.1} parent=0
    _
  %s7 = ssub.s32 1, %s5
  %s8 = scalar_select 0, %s7, %s5
  // Predicated region
  $region2: #{fasd_forward.1} parent=0 // pred_check
    _
  $region3: #{fasd_forward.1} parent=0 // pred_check_branch
    %10 = sbr.rel (0) target = $region5
  $region4: #{fasd_forward.1} parent=0 // pred_region
    _
  $region5: #{fasd_forward.1} parent=0 // pred_fallthru
    _
  // Predicated region
  $region6: #{fasd_forward.1} parent=0 // pred_check
    _
  $region7: #{fasd_forward.1} parent=0 // pred_check_branch
    %12 = sbr.rel (0) target = $region9
  $region8: #{fasd_forward.1} parent=0 // pred_region
    _
  $region9: #{fasd_forward.1} parent=0 // pred_fallthru
    _
  // Predicated region
  $region10: #{fasd_forward.1} parent=0 // pred_check
    _
  $region11: #{fasd_forward.1} parent=0 // pred_check_branch
    %14 = sbr.rel (0) target = $region13
  $region12: #{fasd_forward.1} parent=0 // pred_region
    _
  $region13: #{fasd_forward.1} parent=0 // pred_fallthru
    _
  // Predicated region
  $region14: #{fasd_forward.1} parent=0 // pred_check
    _
  $region15: #{fasd_forward.1} parent=0 // pred_check_branch
    %16 = sbr.rel (0) target = $region17
  $region16: #{fasd_forward.1} parent=0 // pred_region
    _
  $region17: #{fasd_forward.1} parent=0 // pred_fallthru
    _
  %v18 = vld [vmem:[%s0] sm:$0xf]
  %v19 = vld [vmem:[%s0 + $0x4] sm:$0xf]
  %v20 = vld [vmem:[%s1] sm:$0xf]
  %v21 = vld [vmem:[%s1 + $0x4] sm:$0xf]
  %v22 = vld [vmem:[%s1 + $0x8] sm:$0xf]
  %v23 = vld [vmem:[%s1 + $0xc] sm:$0xf]
  %v26 = vunpack.c.l.b16 %v18
  %v27 = vunpack.c.l.b16 %v19
  %v28 = vpack.c.b16 %v27, %v26
  %v33 = vunpack.c.l.b16 %v20
  %v34 = vunpack.c.l.b16 %v21
  %v35 = vunpack.c.l.b16 %v22
  %v36 = vunpack.c.l.b16 %v23
  %v37 = vpack.c.b16 %v34, %v33
  %v38 = vpack.c.b16 %v36, %v35
  %vm41 = vcmask 261120
  %v43 = vsel %vm41, %v28, 0
  %45 = vmatprep.subr.bf16.mxu0 0
  %46 = vmatpush1.bf16.msra.mxu0 %v37
  %47 = vmatprep.subr.bf16.mxu0 0
  %48 = vmatpush1.bf16.msra.mxu0 %v38
  %49 = vmatprep.subr.bf16.mxu0 0
  %50 = vmatpush1.bf16.msra.mxu0 0
  %51 = vmatprep.subr.bf16.mxu0 0
  %52 = vmatpush1.bf16.msra.mxu0 0
  %53 = vmatprep.subr.bf16.mxu0 0
  %54 = vmatpush1.bf16.msra.mxu0 0
  %55 = vmatprep.subr.bf16.mxu0 0
  %56 = vmatpush1.bf16.msra.mxu0 0
  %57 = vmatprep.subr.bf16.mxu0 0
  %58 = vmatpush1.bf16.msra.mxu0 0
  %59 = vmatprep.subr.bf16.mxu0 0
  %60 = vmatpush1.bf16.msra.mxu0 0
  %61 = vmatprep.subr.bf16.mxu0 0
  %62 = vmatpush1.bf16.msra.mxu0 0
  %63 = vmatprep.subr.bf16.mxu0 0
  %64 = vmatpush1.bf16.msra.mxu0 0
  %65 = vmatprep.subr.bf16.mxu0 0
  %66 = vmatpush1.bf16.msra.mxu0 0
  %67 = vmatprep.subr.bf16.mxu0 0
  %68 = vmatpush1.bf16.msra.mxu0 0
  %69 = vmatprep.subr.bf16.mxu0 0
  %70 = vmatpush1.bf16.msra.mxu0 0
  %71 = vmatprep.subr.bf16.mxu0 0
  %72 = vmatpush1.bf16.msra.mxu0 0
  %73 = vmatprep.subr.bf16.mxu0 0
  %74 = vmatpush1.bf16.msra.mxu0 0
  %75 = vmatprep.subr.bf16.mxu0 0
  %76 = vmatpush1.bf16.msra.mxu0 0
  %77 = vmatprep.mubr.bf16.mxu0 0
  %78 = vmatmul.mubr.bf16.gmra.mrb[0].mxu0 %v43
  %v79 = vpop.f32.mrb[0].mxu0
  %v80 = vadd.f32 0.0, %v79
  %v81 = vpop.f32.mrb[0].mxu0
  %v82 = vpop.f32.mrb[0].mxu0
  %v83 = vadd.f32 0.0, %v82
  %v84 = vpop.f32.mrb[0].mxu0
  %85 = vdwg.mxu0
  %v86 = vmax.f32 %v80, 0.0
  %v87 = vmax.f32 %v83, 0.0
  %v88 = vpack.c.bf16 %v87, %v86
  %v89 = vld [vmem:[%s2] sm:$0xf]
  %v90 = vld [vmem:[%s2 + $0x4] sm:$0xf]
  %v91 = vld [vmem:[%s2 + $0x8] sm:$0xf]
  %v92 = vld [vmem:[%s2 + $0xc] sm:$0xf]
  %v93 = vld [vmem:[%s3] sm:$0x1]
  %v95 = vlaneseq
  %v96 = vshrl.u32 %v95, 7
  %v97 = vsub.s32 0, %v96
  %v98 = vrot.slane %v93, %v97
  %v104 = vunpack.c.l.b16 %v89
  %v105 = vunpack.c.l.b16 %v90
  %v106 = vunpack.c.l.b16 %v91
  %v107 = vunpack.c.l.b16 %v92
  %v108 = vpack.c.b16 %v105, %v104
  %v109 = vpack.c.b16 %v107, %v106
  %v113 = vsel %vm41, %v88, 0
  %115 = vmatprep.subr.bf16.mxu0 0
  %116 = vmatpush1.bf16.msra.mxu0 %v108
  %117 = vmatprep.subr.bf16.mxu0 0
  %118 = vmatpush1.bf16.msra.mxu0 %v109
  %119 = vmatprep.subr.bf16.mxu0 0
  %120 = vmatpush1.bf16.msra.mxu0 0
  %121 = vmatprep.subr.bf16.mxu0 0
  %122 = vmatpush1.bf16.msra.mxu0 0
  %123 = vmatprep.subr.bf16.mxu0 0
  %124 = vmatpush1.bf16.msra.mxu0 0
  %125 = vmatprep.subr.bf16.mxu0 0
  %126 = vmatpush1.bf16.msra.mxu0 0
  %127 = vmatprep.subr.bf16.mxu0 0
  %128 = vmatpush1.bf16.msra.mxu0 0
  %129 = vmatprep.subr.bf16.mxu0 0
  %130 = vmatpush1.bf16.msra.mxu0 0
  %131 = vmatprep.subr.bf16.mxu0 0
  %132 = vmatpush1.bf16.msra.mxu0 0
  %133 = vmatprep.subr.bf16.mxu0 0
  %134 = vmatpush1.bf16.msra.mxu0 0
  %135 = vmatprep.subr.bf16.mxu0 0
  %136 = vmatpush1.bf16.msra.mxu0 0
  %137 = vmatprep.subr.bf16.mxu0 0
  %138 = vmatpush1.bf16.msra.mxu0 0
  %139 = vmatprep.subr.bf16.mxu0 0
  %140 = vmatpush1.bf16.msra.mxu0 0
  %141 = vmatprep.subr.bf16.mxu0 0
  %142 = vmatpush1.bf16.msra.mxu0 0
  %143 = vmatprep.subr.bf16.mxu0 0
  %144 = vmatpush1.bf16.msra.mxu0 0
  %145 = vmatprep.subr.bf16.mxu0 0
  %146 = vmatpush1.bf16.msra.mxu0 0
  %147 = vmatprep.mubr.bf16.mxu0 0
  %148 = vmatmul.mubr.bf16.gmra.mrb[0].mxu0 %v113
  %v149 = vpop.f32.mrb[0].mxu0
  %v150 = vadd.f32 %v98, %v149
  %v151 = vpop.f32.mrb[0].mxu0
  %v152 = vpop.f32.mrb[0].mxu0
  %v153 = vadd.f32 %v98, %v152
  %v154 = vpop.f32.mrb[0].mxu0
  %155 = vdwg.mxu0
  %vm156 = vcmask 64512
  %v157 = vsel %vm156, %v150, -inf
  %158 = vmax.xlane.f32.xlu0 %v157
  %v159 = vpop.xlane.xlu0 %158
  %v160 = vsel %vm156, %v153, -inf
  %161 = vmax.xlane.f32.xlu0 %v160
  %v162 = vpop.xlane.xlu0 %161
  %v163 = vsub.f32 %v150, %v159
  %v164 = vsub.f32 %v153, %v162
  %v165 = vmul.f32 %v163, 1.442695
  %v166 = vpow.pop %v165
  %v167 = vmul.f32 %v164, 1.442695
  %v168 = vpow.pop %v167
  %v169 = vsel %vm156, %v166, 0.0
  %170 = vadd.xlane.f32.xlu0 %v169
  %v171 = vpop.xlane.xlu0 %170
  %v172 = vsel %vm156, %v168, 0.0
  %173 = vadd.xlane.f32.xlu0 %v172
  %v174 = vpop.xlane.xlu0 %173
  %v175 = vrcp.pop %v171
  %v176 = vrcp.pop %v174
  %v177 = vmul.f32 %v166, %v175
  %v178 = vmul.f32 %v168, %v176
  %179 = vst.msk [vmem:[%s4] sm:$0xff] %vm156, %v177
  %180 = vst.msk [vmem:[%s4 + $0x8] sm:$0xff] %vm156, %v178
  // Predicated region
  $region18: #{fasd_forward.1} parent=0 // pred_check
    _
  $region19: #{fasd_forward.1} parent=0 // pred_check_branch
    %182 = sbr.rel (0) target = $region21
  $region20: #{fasd_forward.1} parent=0 // pred_region
    _
  $region21: #{fasd_forward.1} parent=0 // pred_fallthru
    _
  // Predicated region
  $region22: #{fasd_forward.1} parent=0 // pred_check
    _
  $region23: #{fasd_forward.1} parent=0 // pred_check_branch
    %184 = sbr.rel (0) target = $region25
  $region24: #{fasd_forward.1} parent=0 // pred_region
    _
  $region25: #{fasd_forward.1} parent=0 // pred_fallthru
    _

// kernel: fasd_forward.1
$region0: #{fasd_forward.1}
  #allocation0 [shape = 'u32[]', space=smem, size = 0x4, offset = 0x4, fixed_abs, tag = 'smem constant byte address 0x4 - core index']
  #allocation1 [shape = 'u32[144,128]{1,0:T(1,128)}', space=vmem, size = 0x12000, scoped, tag = 'internal scratch']
  %s0 = inlined_call_operand.vmem [shape: bf16[16,32], index: 0, kind: input, shape index: {}]
  %s1 = inlined_call_operand.vmem [shape: bf16[32,32], index: 1, kind: input, shape index: {}]
  %s2 = inlined_call_operand.vmem [shape: bf16[32,8], index: 2, kind: input, shape index: {}]
  %s3 = inlined_call_operand.vmem [shape: f32[1,8], index: 3, kind: input, shape index: {}]
  %s4 = inlined_call_operand.vmem [shape: f32[16,8], index: 4, kind: output, shape index: {}]
  %s5 = sld [smem:[#allocation0]]
  $region26: #{fasd_forward.1} parent=0
    _
  %s7 = ssub.s32 1, %s5
  %s8 = scalar_select 0, %s7, %s5
  // Predicated region
  $region2: #{fasd_forward.1} parent=0 // pred_check
    _
  $region3: #{fasd_forward.1} parent=0 // pred_check_branch
    %10 = sbr.rel (0) target = $region5
  $region4: #{fasd_forward.1} parent=0 // pred_region
    _
  $region5: #{fasd_forward.1} parent=0 // pred_fallthru
    _
  // Predicated region
  $region6: #{fasd_forward.1} parent=0 // pred_check
    _
  $region7: #{fasd_forward.1} parent=0 // pred_check_branch
    %12 = sbr.rel (0) target = $region9
  $region8: #{fasd_forward.1} parent=0 // pred_region
    _
  $region9: #{fasd_forward.1} parent=0 // pred_fallthru
    _
  // Predicated region
  $region10: #{fasd_forward.1} parent=0 // pred_check
    _
  $region11: #{fasd_forward.1} parent=0 // pred_check_branch
    %14 = sbr.rel (0) target = $region13
  $region12: #{fasd_forward.1} parent=0 // pred_region
    _
  $region13: #{fasd_forward.1} parent=0 // pred_fallthru
    _
  // Predicated region
  $region14: #{fasd_forward.1} parent=0 // pred_check
    _
  $region15: #{fasd_forward.1} parent=0 // pred_check_branch
    %16 = sbr.rel (0) target = $region17
  $region16: #{fasd_forward.1} parent=0 // pred_region
    _
  $region17: #{fasd_forward.1} parent=0 // pred_fallthru
    _
  %v18 = vld [vmem:[%s0] sm:$0xf]
  %v19 = vld [vmem:[%s0 + $0x4] sm:$0xf]
  %v20 = vld [vmem:[%s1] sm:$0xf]
  %v21 = vld [vmem:[%s1 + $0x4] sm:$0xf]
  %v22 = vld [vmem:[%s1 + $0x8] sm:$0xf]
  %v23 = vld [vmem:[%s1 + $0xc] sm:$0xf]
  %v26 = vunpack.c.l.b16 %v18
  %v27 = vunpack.c.l.b16 %v19
  %v28 = vpack.c.b16 %v27, %v26
  %v33 = vunpack.c.l.b16 %v20
  %v34 = vunpack.c.l.b16 %v21
  %v35 = vunpack.c.l.b16 %v22
  %v36 = vunpack.c.l.b16 %v23
  %v37 = vpack.c.b16 %v34, %v33
  %v38 = vpack.c.b16 %v36, %v35
  %vm41 = vcmask 261120
  %v43 = vsel %vm41, %v28, 0
  %45 = vmatprep.subr.bf16.mxu0 0
  %46 = vmatpush1.bf16.msra.mxu0 %v37
  %47 = vmatprep.subr.bf16.mxu0 0
  %48 = vmatpush1.bf16.msra.mxu0 %v38
  %49 = vmatprep.subr.bf16.mxu0 0
  %50 = vmatpush1.bf16.msra.mxu0 0
  %51 = vmatprep.subr.bf16.mxu0 0
  %52 = vmatpush1.bf16.msra.mxu0 0
  %53 = vmatprep.subr.bf16.mxu0 0
  %54 = vmatpush1.bf16.msra.mxu0 0
  %55 = vmatprep.subr.bf16.mxu0 0
  %56 = vmatpush1.bf16.msra.mxu0 0
  %57 = vmatprep.subr.bf16.mxu0 0
  %58 = vmatpush1.bf16.msra.mxu0 0
  %59 = vmatprep.subr.bf16.mxu0 0
  %60 = vmatpush1.bf16.msra.mxu0 0
  %61 = vmatprep.subr.bf16.mxu0 0
  %62 = vmatpush1.bf16.msra.mxu0 0
  %63 = vmatprep.subr.bf16.mxu0 0
  %64 = vmatpush1.bf16.msra.mxu0 0
  %65 = vmatprep.subr.bf16.mxu0 0
  %66 = vmatpush1.bf16.msra.mxu0 0
  %67 = vmatprep.subr.bf16.mxu0 0
  %68 = vmatpush1.bf16.msra.mxu0 0
  %69 = vmatprep.subr.bf16.mxu0 0
  %70 = vmatpush1.bf16.msra.mxu0 0
  %71 = vmatprep.subr.bf16.mxu0 0
  %72 = vmatpush1.bf16.msra.mxu0 0
  %73 = vmatprep.subr.bf16.mxu0 0
  %74 = vmatpush1.bf16.msra.mxu0 0
  %75 = vmatprep.subr.bf16.mxu0 0
  %76 = vmatpush1.bf16.msra.mxu0 0
  %77 = vmatprep.mubr.bf16.mxu0 0
  %78 = vmatmul.mubr.bf16.gmra.mrb[0].mxu0 %v43
  %v79 = vpop.f32.mrb[0].mxu0
  %v80 = vadd.f32 0.0, %v79
  %v81 = vpop.f32.mrb[0].mxu0
  %v82 = vpop.f32.mrb[0].mxu0
  %v83 = vadd.f32 0.0, %v82
  %v84 = vpop.f32.mrb[0].mxu0
  %85 = vdwg.mxu0
  %v86 = vmax.f32 %v80, 0.0
  %v87 = vmax.f32 %v83, 0.0
  %v88 = vpack.c.bf16 %v87, %v86
  %v89 = vld [vmem:[%s2] sm:$0xf]
  %v90 = vld [vmem:[%s2 + $0x4] sm:$0xf]
  %v91 = vld [vmem:[%s2 + $0x8] sm:$0xf]
  %v92 = vld [vmem:[%s2 + $0xc] sm:$0xf]
  %v93 = vld [vmem:[%s3] sm:$0x1]
  %v95 = vlaneseq
  %v96 = vshrl.u32 %v95, 7
  %v97 = vsub.s32 0, %v96
  %v98 = vrot.slane %v93, %v97
  %v104 = vunpack.c.l.b16 %v89
  %v105 = vunpack.c.l.b16 %v90
  %v106 = vunpack.c.l.b16 %v91
  %v107 = vunpack.c.l.b16 %v92
  %v108 = vpack.c.b16 %v105, %v104
  %v109 = vpack.c.b16 %v107, %v106
  %v113 = vsel %vm41, %v88, 0
  %115 = vmatprep.subr.bf16.mxu0 0
  %116 = vmatpush1.bf16.msra.mxu0 %v108
  %117 = vmatprep.subr.bf16.mxu0 0
  %118 = vmatpush1.bf16.msra.mxu0 %v109
  %119 = vmatprep.subr.bf16.mxu0 0
  %120 = vmatpush1.bf16.msra.mxu0 0
  %121 = vmatprep.subr.bf16.mxu0 0
  %122 = vmatpush1.bf16.msra.mxu0 0
  %123 = vmatprep.subr.bf16.mxu0 0
  %124 = vmatpush1.bf16.msra.mxu0 0
  %125 = vmatprep.subr.bf16.mxu0 0
  %126 = vmatpush1.bf16.msra.mxu0 0
  %127 = vmatprep.subr.bf16.mxu0 0
  %128 = vmatpush1.bf16.msra.mxu0 0
  %129 = vmatprep.subr.bf16.mxu0 0
  %130 = vmatpush1.bf16.msra.mxu0 0
  %131 = vmatprep.subr.bf16.mxu0 0
  %132 = vmatpush1.bf16.msra.mxu0 0
  %133 = vmatprep.subr.bf16.mxu0 0
  %134 = vmatpush1.bf16.msra.mxu0 0
  %135 = vmatprep.subr.bf16.mxu0 0
  %136 = vmatpush1.bf16.msra.mxu0 0
  %137 = vmatprep.subr.bf16.mxu0 0
  %138 = vmatpush1.bf16.msra.mxu0 0
  %139 = vmatprep.subr.bf16.mxu0 0
  %140 = vmatpush1.bf16.msra.mxu0 0
  %141 = vmatprep.subr.bf16.mxu0 0
  %142 = vmatpush1.bf16.msra.mxu0 0
  %143 = vmatprep.subr.bf16.mxu0 0
  %144 = vmatpush1.bf16.msra.mxu0 0
  %145 = vmatprep.subr.bf16.mxu0 0
  %146 = vmatpush1.bf16.msra.mxu0 0
  %147 = vmatprep.mubr.bf16.mxu0 0
  %148 = vmatmul.mubr.bf16.gmra.mrb[0].mxu0 %v113
  %v149 = vpop.f32.mrb[0].mxu0
  %v150 = vadd.f32 %v98, %v149
  %v151 = vpop.f32.mrb[0].mxu0
  %v152 = vpop.f32.mrb[0].mxu0
  %v153 = vadd.f32 %v98, %v152
  %v154 = vpop.f32.mrb[0].mxu0
  %155 = vdwg.mxu0
  %vm156 = vcmask 64512
  %v157 = vsel %vm156, %v150, -inf
  %158 = vmax.xlane.f32.xlu0 %v157
  %v159 = vpop.xlane.xlu0 %158
  %v160 = vsel %vm156, %v153, -inf
  %161 = vmax.xlane.f32.xlu0 %v160
  %v162 = vpop.xlane.xlu0 %161
  %v163 = vsub.f32 %v150, %v159
  %v164 = vsub.f32 %v153, %v162
  %v165 = vmul.f32 %v163, 1.442695
  %v166 = vpow.pop %v165
  %v167 = vmul.f32 %v164, 1.442695
  %v168 = vpow.pop %v167
  %v169 = vsel %vm156, %v166, 0.0
  %170 = vadd.xlane.f32.xlu0 %v169
  %v171 = vpop.xlane.xlu0 %170
  %v172 = vsel %vm156, %v168, 0.0
  %173 = vadd.xlane.f32.xlu0 %v172
  %v174 = vpop.xlane.xlu0 %173
  %v175 = vrcp.pop %v171
  %v176 = vrcp.pop %v174
  %v177 = vmul.f32 %v166, %v175
  %v178 = vmul.f32 %v168, %v176
  %179 = vst.msk [vmem:[%s4] sm:$0xff] %vm156, %v177
  %180 = vst.msk [vmem:[%s4 + $0x8] sm:$0xff] %vm156, %v178
  // Predicated region
  $region18: #{fasd_forward.1} parent=0 // pred_check
    _
  $region19: #{fasd_forward.1} parent=0 // pred_check_branch
    %182 = sbr.rel (0) target = $region21
  $region20: #{fasd_forward.1} parent=0 // pred_region
    _
  $region21: #{fasd_forward.1} parent=0 // pred_fallthru
    _
  // Predicated region
  $region22: #{fasd_forward.1} parent=0 // pred_check
    _
  $region23: #{fasd_forward.1} parent=0 // pred_check_branch
    %184 = sbr.rel (0) target = $region25
  $region24: #{fasd_forward.1} parent=0 // pred_region
    _
  $region25: #{fasd_forward.1} parent=0 // pred_fallthru
    _

</llo_original>
